<compile_context>
chip_gen: v5e
topology: v5e:2x2
jax: 0.10.0
libtpu: 0.0.40
codegen_flags: <defaults>
</compile_context>

<pallas_src>
import functools

import jax
import jax.numpy as jnp
from jax import lax
from jax.experimental import pallas as pl
from jax.experimental.pallas import tpu as pltpu


def _round_up(v, m):
    return ((v + m - 1) // m) * m


# --------------------------------------------------------------------------
# Small row-parallel matmul kernel:  z = x @ W  (reassociated A @ (x @ W_l)
# path; only used when the *padded* output width is narrower than the padded
# input width).  Inputs and output are bf16 (MXU operands).
# --------------------------------------------------------------------------
def _rowwise_matmul_kernel(x_ref, w_ref, o_ref):
    o_ref[...] = jnp.dot(
        x_ref[...], w_ref[...], preferred_element_type=jnp.float32
    ).astype(o_ref.dtype)


def rowwise_matmul(x_bf16, w_bf16, tm):
    n, f_in = x_bf16.shape
    f_out = w_bf16.shape[1]
    return pl.pallas_call(
        _rowwise_matmul_kernel,
        out_shape=jax.ShapeDtypeStruct((n, f_out), jnp.bfloat16),
        grid=(n // tm,),
        in_specs=[
            pl.BlockSpec((tm, f_in), lambda i: (i, 0)),
            pl.BlockSpec((f_in, f_out), lambda i: (0, 0)),
        ],
        out_specs=pl.BlockSpec((tm, f_out), lambda i: (i, 0)),
        compiler_params=pltpu.CompilerParams(
            dimension_semantics=("parallel",),
            vmem_limit_bytes=48 * 1024 * 1024,
        ),
        cost_estimate=pl.CostEstimate(
            flops=2 * n * f_in * f_out,
            transcendentals=0,
            bytes_accessed=x_bf16.nbytes + w_bf16.nbytes + n * f_out * 2,
        ),
    )(x_bf16, w_bf16)


# --------------------------------------------------------------------------
# Tiled SAGEConv layer kernel:  out = act( (A @ z) [@ W_l] + x @ W_r + b )
#   grid = (n_pad/tm, n_pad/tk);  k (reduction) last, marked "arbitrary".
# --------------------------------------------------------------------------
def _sage_layer_kernel(*refs, activation, reassociated, f_out, resident_z, tk):
    if reassociated:
        a_ref, z_ref, xs_ref, wr_ref, b_ref, o_ref, acc_ref = refs
        wl_ref = None
    else:
        a_ref, z_ref, xs_ref, wl_ref, wr_ref, b_ref, o_ref, acc_ref = refs

    k = pl.program_id(1)

    @pl.when(k == 0)
    def _():
        acc_ref[...] = jnp.zeros_like(acc_ref)

    if resident_z:
        # z is a single VMEM-resident full array; pick the k-th row block.
        start = pl.multiple_of(k * tk, tk)
        z_tile = z_ref[pl.ds(start, tk), :]
    else:
        z_tile = z_ref[...]

    # Dominant N^2 matmul: bf16 operands straight from HBM, f32 accumulation.
    acc_ref[...] += jnp.dot(a_ref[...], z_tile, preferred_element_type=jnp.float32)

    @pl.when(k == pl.num_programs(1) - 1)
    def _():
        agg = acc_ref[...]
        if reassociated:
            out = agg  # z was already x @ W_l
        else:
            out = jnp.dot(
                agg.astype(jnp.bfloat16), wl_ref[...],
                preferred_element_type=jnp.float32,
            )
        out = out + jnp.dot(
            xs_ref[...], wr_ref[...], preferred_element_type=jnp.float32
        )
        out = out + b_ref[...]

        if activation == "relu":
            out = jnp.maximum(out, 0.0)
        elif activation == "log_softmax":
            # log_softmax over features; padded lanes masked so they do not
            # perturb the max / sum.
            lane = lax.broadcasted_iota(jnp.int32, out.shape, 1)
            valid = lane < f_out
            masked = jnp.where(valid, out, -jnp.inf)
            m = jnp.max(masked, axis=1, keepdims=True)
            e = jnp.where(valid, jnp.exp(out - m), 0.0)
            lse = jnp.log(jnp.sum(e, axis=1, keepdims=True))
            out = out - m - lse

        o_ref[...] = out.astype(o_ref.dtype)


def _pick_tile(n_pad):
    if n_pad <= 512:
        return n_pad
    # n_pad is a multiple of 512 here.  Prefer 1024 but keep >=2 row blocks
    # so both v7x TensorCores get work along the "parallel" axis.
    if n_pad % 1024 == 0 and n_pad // 1024 >= 2:
        return 1024
    return 512


def sage_layer(a, x_p, w_l, w_r, b, *, activation, out_dtype):
    """One SAGEConv layer on padded node rows.

    a:   [n_pad, n_pad] bf16 row-normalized (mean) aggregation matrix
    x_p: [n_pad, F_in_pad] bf16 node features (rows / lanes zero-padded)
    w_l: [F_in, F_out] f32 neighbor-aggregate weight
    w_r: [F_in, F_out] f32 root (self) weight
    b:   [1, F_out]    f32 bias (lin_l bias; lin_r has no bias, as in PyG)
    returns [n_pad, F_out_pad] in out_dtype (padded width kept between layers)
    """
    n_pad = a.shape[0]
    f_in, f_out = w_l.shape
    f_in_p = _round_up(f_in, 128)
    f_out_p = _round_up(f_out, 128)
    assert x_p.shape == (n_pad, f_in_p)

    # Pad + pre-cast weights/bias outside the kernel (hoisted casts).
    wl_p = jnp.pad(w_l, ((0, f_in_p - f_in), (0, f_out_p - f_out))).astype(jnp.bfloat16)
    wr_p = jnp.pad(w_r, ((0, f_in_p - f_in), (0, f_out_p - f_out))).astype(jnp.bfloat16)
    b_p = jnp.pad(b, ((0, 0), (0, f_out_p - f_out))).astype(jnp.float32)

    tm = tk = _pick_tile(n_pad)
    grid = (n_pad // tm, n_pad // tk)

    # Reassociate A @ (x @ W_l) only when the PADDED output width is narrower
    # than the padded input width (otherwise it saves nothing in the N^2
    # sweep and just adds an HBM round trip).
    reassociated = f_out_p < f_in_p
    if reassociated:
        z = rowwise_matmul(x_p, wl_p, tm)  # [n_pad, f_out_p] bf16
        fz = f_out_p
    else:
        z = x_p
        fz = f_in_p

    # Keep z VMEM-resident across the whole grid when it is small enough
    # (conservative 16 MiB budget -> safe on v7x's 64 MiB VMEM).
    resident_z = z.nbytes <= 16 * 1024 * 1024
    if resident_z:
        z_spec = pl.BlockSpec((n_pad, fz), lambda i, k: (0, 0))
    else:
        z_spec = pl.BlockSpec((tk, fz), lambda i, k: (k, 0))

    kernel = functools.partial(
        _sage_layer_kernel,
        activation=activation,
        reassociated=reassociated,
        f_out=f_out,
        resident_z=resident_z,
        tk=tk,
    )

    in_specs = [
        pl.BlockSpec((tm, tk), lambda i, k: (i, k)),        # A tile (bf16)
        z_spec,                                             # z (x or x@W_l)
        pl.BlockSpec((tm, f_in_p), lambda i, k: (i, 0)),    # x self tile
    ]
    args = [a, z, x_p]
    if not reassociated:
        in_specs.append(pl.BlockSpec((f_in_p, f_out_p), lambda i, k: (0, 0)))  # W_l
        args.append(wl_p)
    in_specs += [
        pl.BlockSpec((f_in_p, f_out_p), lambda i, k: (0, 0)),  # W_r (resident)
        pl.BlockSpec((1, f_out_p), lambda i, k: (0, 0)),       # bias (resident)
    ]
    args += [wr_p, b_p]

    flops = 2 * n_pad * n_pad * fz + 2 * n_pad * f_in_p * f_out_p
    if not reassociated:
        flops += 2 * n_pad * f_in_p * f_out_p
    out_bytes = n_pad * f_out_p * jnp.dtype(out_dtype).itemsize
    cost = pl.CostEstimate(
        flops=int(flops),
        transcendentals=int(n_pad * f_out_p) if activation == "log_softmax" else 0,
        bytes_accessed=int(
            a.nbytes + z.nbytes + x_p.nbytes + wl_p.nbytes + wr_p.nbytes
            + b_p.nbytes + out_bytes
        ),
    )

    out = pl.pallas_call(
        kernel,
        out_shape=jax.ShapeDtypeStruct((n_pad, f_out_p), out_dtype),
        grid_spec=pltpu.PrefetchScalarGridSpec(
            num_scalar_prefetch=0,
            grid=grid,
            in_specs=in_specs,
            out_specs=pl.BlockSpec((tm, f_out_p), lambda i, k: (i, 0)),
            scratch_shapes=[pltpu.VMEM((tm, fz), jnp.float32)],
        ),
        compiler_params=pltpu.CompilerParams(
            dimension_semantics=("parallel", "arbitrary"),
            vmem_limit_bytes=48 * 1024 * 1024,
        ),
        cost_estimate=cost,
    )(*args)
    return out  # padded width kept between layers


# --------------------------------------------------------------------------
# Graph preprocessing + full forward.
# --------------------------------------------------------------------------
def build_mean_agg_matrix(edge_index, num_nodes, n_pad, dtype=jnp.bfloat16):
    """Dense mean-aggregation matrix built directly at padded size & dtype."""
    del num_nodes  # edge indices are already < num_nodes <= n_pad
    src, dst = edge_index[0], edge_index[1]
    adj = jnp.zeros((n_pad, n_pad), jnp.float32)
    adj = adj.at[dst, src].add(1.0)  # A[i, j] = #edges j->i
    deg = jnp.sum(adj, axis=1, keepdims=True)
    return (adj / jnp.maximum(deg, 1.0)).astype(dtype)


def sage_forward(x, edge_index, params):
    n, in_dim = x.shape
    out_dim = params["w_l2"].shape[1]
    n_pad = _round_up(n, 8) if n <= 512 else _round_up(n, 512)
    f_in_p = _round_up(in_dim, 128)

    # A at padded size, bf16 in HBM (dominant N^2 stream).
    a = build_mean_agg_matrix(edge_index, n, n_pad, dtype=jnp.bfloat16)

    # Pad + cast node features once (rows and lanes zero-padded).
    x_p = jnp.pad(x, ((0, n_pad - n), (0, f_in_p - in_dim))).astype(jnp.bfloat16)

    # conv1 + ReLU (dropout is identity in eval mode); output kept bf16 at
    # padded width -- it is only ever an MXU operand in layer 2.
    h = sage_layer(
        a, x_p, params["w_l1"], params["w_r1"], params["b1"],
        activation="relu", out_dtype=jnp.bfloat16,
    )
    # conv2 + log_softmax(dim=1); final output stays f32.
    out = sage_layer(
        a, h, params["w_l2"], params["w_r2"], params["b2"],
        activation="log_softmax", out_dtype=jnp.float32,
    )
    return out[:n, :out_dim]


def init_params(key, in_dim, hid_dim, out_dim):
    ks = jax.random.split(key, 6)

    def glorot(k, fan_in, fan_out):
        limit = jnp.sqrt(6.0 / (fan_in + fan_out))
        return jax.random.uniform(k, (fan_in, fan_out), jnp.float32, -limit, limit)

    return {
        "w_l1": glorot(ks[0], in_dim, hid_dim),
        "w_r1": glorot(ks[1], in_dim, hid_dim),
        "b1": jnp.zeros((1, hid_dim), jnp.float32),
        "w_l2": glorot(ks[2], hid_dim, out_dim),
        "w_r2": glorot(ks[3], hid_dim, out_dim),
        "b2": jnp.zeros((1, out_dim), jnp.float32),
    }


if __name__ == "__main__":
    key = jax.random.PRNGKey(0)
    k_x, k_e, k_p = jax.random.split(key, 3)

    num_nodes = 16
    num_edges = 32
    in_dim, hid_dim, out_dim = 8, 32, 4

    x = jax.random.normal(k_x, (num_nodes, in_dim), jnp.float32)
    edge_index = jax.random.randint(k_e, (2, num_edges), 0, num_nodes)
    params = init_params(k_p, in_dim, hid_dim, out_dim)

    out = sage_forward(x, edge_index, params)
    out = jax.block_until_ready(out)

    # Sanity check against a pure-JAX f32 reference (kernel uses bf16 storage
    # of A / features / h with f32 accumulation, so allow a loose tolerance).
    src, dst = edge_index[0], edge_index[1]
    adj = jnp.zeros((num_nodes, num_nodes), jnp.float32).at[dst, src].add(1.0)
    a_ref = adj / jnp.maximum(jnp.sum(adj, axis=1, keepdims=True), 1.0)
    h_ref = jnp.maximum(
        a_ref @ x @ params["w_l1"] + x @ params["w_r1"] + params["b1"], 0.0
    )
    logits = a_ref @ h_ref @ params["w_l2"] + h_ref @ params["w_r2"] + params["b2"]
    ref = jax.nn.log_softmax(logits, axis=1)

    assert out.shape == (num_nodes, out_dim)
    assert bool(jnp.all(jnp.isfinite(out)))
    assert bool(jnp.allclose(out, ref, atol=1e-1, rtol=1e-1)), (
        float(jnp.max(jnp.abs(out - ref)))
    )

    print("KERNEL_OK")
</pallas_src>

<mosaic_0001>
module attributes {stable_mosaic.version = 11 : i64} {
  func.func @_sage_layer_kernel(%arg0: i32, %arg1: i32, %arg2: memref<16x16xbf16, #tpu.memory_space<vmem>>, %arg3: memref<16x128xbf16, #tpu.memory_space<vmem>>, %arg4: memref<16x128xbf16, #tpu.memory_space<vmem>>, %arg5: memref<128x128xbf16, #tpu.memory_space<vmem>>, %arg6: memref<128x128xbf16, #tpu.memory_space<vmem>>, %arg7: memref<1x128xf32, #tpu.memory_space<vmem>>, %arg8: memref<16x128xbf16, #tpu.memory_space<vmem>>, %arg9: memref<16x128xf32, #tpu.memory_space<vmem>>) attributes {dimension_semantics = [#tpu.dimension_semantics<parallel>, #tpu.dimension_semantics<arbitrary>], iteration_bounds = array<i64: 1, 1>, scalar_prefetch = 0 : i64, scratch_operands = 1 : i64, tpu.core_type = #tpu.core_type<tc>, window_params = [{transform_indices = @transform_0, window_bounds = array<i64: 16, 16>}, {pipeline_mode = #tpu.pipeline_mode<synchronous>, transform_indices = @transform_1, window_bounds = array<i64: 16, 128>}, {transform_indices = @transform_2, window_bounds = array<i64: 16, 128>}, {pipeline_mode = #tpu.pipeline_mode<synchronous>, transform_indices = @transform_3, window_bounds = array<i64: 128, 128>}, {pipeline_mode = #tpu.pipeline_mode<synchronous>, transform_indices = @transform_4, window_bounds = array<i64: 128, 128>}, {pipeline_mode = #tpu.pipeline_mode<synchronous>, transform_indices = @transform_5, window_bounds = array<i64: 1, 128>}, {transform_indices = @transform_6, window_bounds = array<i64: 16, 128>}]} {
    %c0_i32 = arith.constant 0 : i32
    %0 = arith.cmpi eq, %arg1, %c0_i32 : i32
    %1 = arith.extui %0 : i1 to i32
    %c0_i32_0 = arith.constant 0 : i32
    %2 = arith.cmpi ne, %1, %c0_i32_0 : i32
    scf.if %2 {
      %cst_9 = arith.constant 0.000000e+00 : f32
      %15 = vector.broadcast %cst_9 : f32 to vector<16x128xf32>
      %c0_10 = arith.constant 0 : index
      %c0_11 = arith.constant 0 : index
      %16 = vector.load %arg9[%c0_10, %c0_11] : memref<16x128xf32, #tpu.memory_space<vmem>>, vector<16x128xf32>
      tpu.vector_store %arg9[%c0_10, %c0_11], %15 {strides = array<i32>} : memref<16x128xf32, #tpu.memory_space<vmem>>, vector<16x128xf32>,
    } else {
    }
    %c16_i32 = arith.constant 16 : i32
    %3 = arith.muli %arg1, %c16_i32 : i32
    %4 = tpu.assume_multiple %3, 16 : i32
    %5 = arith.index_cast %4 : i32 to index
    %c0 = arith.constant 0 : index
    %6 = vector.load %arg3[%5, %c0] : memref<16x128xbf16, #tpu.memory_space<vmem>>, vector<16x128xbf16>
    %c0_1 = arith.constant 0 : index
    %c0_2 = arith.constant 0 : index
    %7 = vector.load %arg9[%c0_1, %c0_2] : memref<16x128xf32, #tpu.memory_space<vmem>>, vector<16x128xf32>
    %c0_3 = arith.constant 0 : index
    %c0_4 = arith.constant 0 : index
    %8 = vector.load %arg2[%c0_3, %c0_4] : memref<16x16xbf16, #tpu.memory_space<vmem>>, vector<16x16xbf16>
    %cst = arith.constant dense<0.000000e+00> : vector<16x128xf32>
    %9 = tpu.matmul %8, %6, %cst {dimension_numbers = #tpu.dot_dimension_numbers<[1], [0], [0], [1], [0, 0, 1, 1], [], []>} : vector<16x16xbf16>, vector<16x128xbf16>, vector<16x128xf32> -> vector<16x128xf32>
    %10 = arith.addf %7, %9 : vector<16x128xf32>
    %c0_5 = arith.constant 0 : index
    %c0_6 = arith.constant 0 : index
    %11 = vector.load %arg9[%c0_5, %c0_6] : memref<16x128xf32, #tpu.memory_space<vmem>>, vector<16x128xf32>
    tpu.vector_store %arg9[%c0_5, %c0_6], %10 {strides = array<i32>} : memref<16x128xf32, #tpu.memory_space<vmem>>, vector<16x128xf32>,
    %c0_i32_7 = arith.constant 0 : i32
    %12 = arith.cmpi eq, %arg1, %c0_i32_7 : i32
    %13 = arith.extui %12 : i1 to i32
    %c0_i32_8 = arith.constant 0 : i32
    %14 = arith.cmpi ne, %13, %c0_i32_8 : i32
    scf.if %14 {
      %c0_9 = arith.constant 0 : index
      %c0_10 = arith.constant 0 : index
      %15 = vector.load %arg9[%c0_9, %c0_10] : memref<16x128xf32, #tpu.memory_space<vmem>>, vector<16x128xf32>
      %16 = arith.truncf %15 : vector<16x128xf32> to vector<16x128xbf16>
      %c0_11 = arith.constant 0 : index
      %c0_12 = arith.constant 0 : index
      %17 = vector.load %arg5[%c0_11, %c0_12] : memref<128x128xbf16, #tpu.memory_space<vmem>>, vector<128x128xbf16>
      %cst_13 = arith.constant dense<0.000000e+00> : vector<16x128xf32>
      %18 = tpu.matmul %16, %17, %cst_13 {dimension_numbers = #tpu.dot_dimension_numbers<[1], [0], [0], [1], [0, 0, 1, 1], [], []>} : vector<16x128xbf16>, vector<128x128xbf16>, vector<16x128xf32> -> vector<16x128xf32>
      %c0_14 = arith.constant 0 : index
      %c0_15 = arith.constant 0 : index
      %19 = vector.load %arg4[%c0_14, %c0_15] : memref<16x128xbf16, #tpu.memory_space<vmem>>, vector<16x128xbf16>
      %c0_16 = arith.constant 0 : index
      %c0_17 = arith.constant 0 : index
      %20 = vector.load %arg6[%c0_16, %c0_17] : memref<128x128xbf16, #tpu.memory_space<vmem>>, vector<128x128xbf16>
      %cst_18 = arith.constant dense<0.000000e+00> : vector<16x128xf32>
      %21 = tpu.matmul %19, %20, %cst_18 {dimension_numbers = #tpu.dot_dimension_numbers<[1], [0], [0], [1], [0, 0, 1, 1], [], []>} : vector<16x128xbf16>, vector<128x128xbf16>, vector<16x128xf32> -> vector<16x128xf32>
      %22 = arith.addf %18, %21 : vector<16x128xf32>
      %c0_19 = arith.constant 0 : index
      %c0_20 = arith.constant 0 : index
      %23 = vector.load %arg7[%c0_19, %c0_20] : memref<1x128xf32, #tpu.memory_space<vmem>>, vector<1x128xf32>
      %24 = vector.broadcast %23 : vector<1x128xf32> to vector<16x128xf32>
      %25 = arith.addf %22, %24 : vector<16x128xf32>
      %cst_21 = arith.constant 0.000000e+00 : f32
      %26 = vector.broadcast %cst_21 : f32 to vector<16x128xf32>
      %27 = arith.maximumf %25, %26 : vector<16x128xf32>
      %28 = arith.truncf %27 : vector<16x128xf32> to vector<16x128xbf16>
      %c0_22 = arith.constant 0 : index
      %c0_23 = arith.constant 0 : index
      %29 = vector.load %arg8[%c0_22, %c0_23] : memref<16x128xbf16, #tpu.memory_space<vmem>>, vector<16x128xbf16>
      tpu.vector_store %arg8[%c0_22, %c0_23], %28 {strides = array<i32>} : memref<16x128xbf16, #tpu.memory_space<vmem>>, vector<16x128xbf16>,
    } else {
    }
    return
  }
  func.func @transform_0(%arg0: i32, %arg1: i32) -> (i32, i32) {
    %c0_i32 = arith.constant 0 : i32
    return %arg0, %arg1 : i32, i32
  }
  func.func @transform_1(%arg0: i32, %arg1: i32) -> (i32, i32) {
    %c0_i32 = arith.constant 0 : i32
    %c0_i32_0 = arith.constant 0 : i32
    %c0_i32_1 = arith.constant 0 : i32
    return %c0_i32, %c0_i32_0 : i32, i32
  }
  func.func @transform_2(%arg0: i32, %arg1: i32) -> (i32, i32) {
    %c0_i32 = arith.constant 0 : i32
    %c0_i32_0 = arith.constant 0 : i32
    return %arg0, %c0_i32 : i32, i32
  }
  func.func @transform_3(%arg0: i32, %arg1: i32) -> (i32, i32) {
    %c0_i32 = arith.constant 0 : i32
    %c0_i32_0 = arith.constant 0 : i32
    %c0_i32_1 = arith.constant 0 : i32
    return %c0_i32, %c0_i32_0 : i32, i32
  }
  func.func @transform_4(%arg0: i32, %arg1: i32) -> (i32, i32) {
    %c0_i32 = arith.constant 0 : i32
    %c0_i32_0 = arith.constant 0 : i32
    %c0_i32_1 = arith.constant 0 : i32
    return %c0_i32, %c0_i32_0 : i32, i32
  }
  func.func @transform_5(%arg0: i32, %arg1: i32) -> (i32, i32) {
    %c0_i32 = arith.constant 0 : i32
    %c0_i32_0 = arith.constant 0 : i32
    %c0_i32_1 = arith.constant 0 : i32
    return %c0_i32, %c0_i32_0 : i32, i32
  }
  func.func @transform_6(%arg0: i32, %arg1: i32) -> (i32, i32) {
    %c0_i32 = arith.constant 0 : i32
    %c0_i32_0 = arith.constant 0 : i32
    return %arg0, %c0_i32 : i32, i32
  }
}

</mosaic_0001>

<llo_original>
// kernel: tpu_custom_call.1
$region0: #{tpu_custom_call.1}
  #allocation0 [shape = 'u32[]', space=smem, size = 0x4, offset = 0x4, fixed_abs, tag = 'smem constant byte address 0x4 - core index']
  #allocation1 [shape = 'u32[72,128]{1,0:T(1,128)}', space=vmem, size = 0x9000, scoped, tag = 'internal scratch']
  #allocation2 [shape = 'f32[16,128]{1,0:T(8,128)}', space=vmem, size = 0x2000, scoped, tag = 'scratch operand']
  %s0 = inlined_call_operand.hbm [shape: bf16[16,16], index: 0, kind: input, shape index: {}]
  %s1 = inlined_call_operand.hbm [shape: bf16[16,128], index: 1, kind: input, shape index: {}]
  %s2 = inlined_call_operand.hbm [shape: bf16[16,128], index: 2, kind: input, shape index: {}]
  %s3 = inlined_call_operand.hbm [shape: bf16[128,128], index: 3, kind: input, shape index: {}]
  %s4 = inlined_call_operand.hbm [shape: bf16[128,128], index: 4, kind: input, shape index: {}]
  %s5 = inlined_call_operand.vmem [shape: f32[1,128], index: 5, kind: input, shape index: {}]
  %s6 = inlined_call_operand.hbm [shape: bf16[16,128], index: 6, kind: output, shape index: {}]
  %s7 = sld [smem:[#allocation0]]
  $region62: #{tpu_custom_call.1} parent=0
    _
  %s9 = ssub.s32 1, %s7
  %s10 = scalar_select 0, %s9, %s7
  $region1: #{tpu_custom_call.1} parent=0
    #allocation3 [shape = 'u8[4096]{0}', space=vmem, size = 0x1000, scoped, tag = 'input window, operand 0, single buffered']
    #allocation4 [shape = 's32[1]{0}', space=sflag, size = 0x4, scoped, tag = 'scoped memory for tpu_custom_call.1']
    #allocation5 [shape = 's32[1]{0}', space=sflag, size = 0x4, scoped, tag = 'scoped memory for tpu_custom_call.1']
    #allocation6 [shape = 'u8[4096]{0}', space=vmem, size = 0x1000, scoped, tag = 'input window, operand 1, single buffered']
    #allocation7 [shape = 's32[1]{0}', space=sflag, size = 0x4, scoped, tag = 'scoped memory for tpu_custom_call.1']
    #allocation8 [shape = 'u8[4096]{0}', space=vmem, size = 0x1000, scoped, tag = 'input window, operand 2, single buffered']
    #allocation9 [shape = 'u8[32768]{0}', space=vmem, size = 0x8000, scoped, tag = 'input window, operand 3, single buffered']
    #allocation10 [shape = 's32[1]{0}', space=sflag, size = 0x4, scoped, tag = 'scoped memory for tpu_custom_call.1']
    #allocation11 [shape = 'u8[32768]{0}', space=vmem, size = 0x8000, scoped, tag = 'input window, operand 4, single buffered']
    #allocation12 [shape = 'u8[4096]{0}', space=vmem, size = 0x1000, scoped, tag = 'output window, operand 0, single buffered']
    %11 = vsyncpa [#allocation4], 0
    %12 = vsyncpa [#allocation7], 0
    %13 = vsyncpa [#allocation10], 0
    %14 = vsyncpa [#allocation5], 0
    // Predicated region
    $region2: #{tpu_custom_call.1} parent=1 // pred_check
      _
    $region3: #{tpu_custom_call.1} parent=1 // pred_check_branch
      %16 = sbr.rel (0) target = $region5
    $region4: #{tpu_custom_call.1} parent=1 // pred_region
      %18 = vsyncadd [#allocation4], 0
      %s19 = sshll.u32 %s0, 4
      %s20 = int_to_ptr.hbm [resolvable:$true] %s19
      %s21 = sshll.u32 [#allocation3], 4
      %s22 = int_to_ptr.vmem [resolvable:$true] %s21
      %27 = dma.hbm_to_vmem [thread:$0]  %s20, 128, %s22, [#allocation4], 64, 64, 4
    $region5: #{tpu_custom_call.1} parent=1 // pred_fallthru
      _
    // Predicated region
    $region6: #{tpu_custom_call.1} parent=1 // pred_check
      _
    $region7: #{tpu_custom_call.1} parent=1 // pred_check_branch
      %29 = sbr.rel (0) target = $region9
    $region8: #{tpu_custom_call.1} parent=1 // pred_region
      %31 = vsyncadd [#allocation7], 0
      %s32 = sshll.u32 %s1, 4
      %s33 = int_to_ptr.hbm [resolvable:$true] %s32
      %s34 = sshll.u32 [#allocation6], 4
      %s35 = int_to_ptr.vmem [resolvable:$true] %s34
      %40 = dma.hbm_to_vmem [thread:$0]  %s33, 128, %s35, [#allocation7], 64, 64, 4
    $region9: #{tpu_custom_call.1} parent=1 // pred_fallthru
      _
    // Predicated region
    $region10: #{tpu_custom_call.1} parent=1 // pred_check
      _
    $region11: #{tpu_custom_call.1} parent=1 // pred_check_branch
      %42 = sbr.rel (0) target = $region13
    $region12: #{tpu_custom_call.1} parent=1 // pred_region
      %44 = vsyncadd [#allocation7], 0
      %s45 = sshll.u32 %s2, 4
      %s46 = int_to_ptr.hbm [resolvable:$true] %s45
      %s47 = sshll.u32 [#allocation8], 4
      %s48 = int_to_ptr.vmem [resolvable:$true] %s47
      %53 = dma.hbm_to_vmem [thread:$0]  %s46, 128, %s48, [#allocation7], 64, 64, 4
    $region13: #{tpu_custom_call.1} parent=1 // pred_fallthru
      _
    // Predicated region
    $region14: #{tpu_custom_call.1} parent=1 // pred_check
      _
    $region15: #{tpu_custom_call.1} parent=1 // pred_check_branch
      %55 = sbr.rel (0) target = $region17
    $region16: #{tpu_custom_call.1} parent=1 // pred_region
      %57 = vsyncadd [#allocation10], 0
      %s58 = sshll.u32 %s3, 4
      %s59 = int_to_ptr.hbm [resolvable:$true] %s58
      %s60 = sshll.u32 [#allocation9], 4
      %s61 = int_to_ptr.vmem [resolvable:$true] %s60
      %66 = dma.hbm_to_vmem [thread:$0]  %s59, 1024, %s61, [#allocation10], 64, 64, 4
    $region17: #{tpu_custom_call.1} parent=1 // pred_fallthru
      _
    // Predicated region
    $region18: #{tpu_custom_call.1} parent=1 // pred_check
      _
    $region19: #{tpu_custom_call.1} parent=1 // pred_check_branch
      %68 = sbr.rel (0) target = $region21
    $region20: #{tpu_custom_call.1} parent=1 // pred_region
      %70 = vsyncadd [#allocation10], 0
      %s71 = sshll.u32 %s4, 4
      %s72 = int_to_ptr.hbm [resolvable:$true] %s71
      %s73 = sshll.u32 [#allocation11], 4
      %s74 = int_to_ptr.vmem [resolvable:$true] %s73
      %79 = dma.hbm_to_vmem [thread:$0]  %s72, 1024, %s74, [#allocation10], 64, 64, 4
    $region21: #{tpu_custom_call.1} parent=1 // pred_fallthru
      _
    // Predicated region
    $region22: #{tpu_custom_call.1} parent=1 // pred_check
      _
    $region23: #{tpu_custom_call.1} parent=1 // pred_check_branch
      %81 = sbr.rel (0) target = $region25
    $region24: #{tpu_custom_call.1} parent=1 // pred_region
      _
    $region25: #{tpu_custom_call.1} parent=1 // pred_fallthru
      _
    // Predicated region
    $region26: #{tpu_custom_call.1} parent=1 // pred_check
      _
    $region27: #{tpu_custom_call.1} parent=1 // pred_check_branch
      %83 = sbr.rel (0) target = $region29
    $region28: #{tpu_custom_call.1} parent=1 // pred_region
      %85 = dma.done [#allocation4], 128
    $region29: #{tpu_custom_call.1} parent=1 // pred_fallthru
      _
    // Predicated region
    $region30: #{tpu_custom_call.1} parent=1 // pred_check
      _
    $region31: #{tpu_custom_call.1} parent=1 // pred_check_branch
      %87 = sbr.rel (0) target = $region33
    $region32: #{tpu_custom_call.1} parent=1 // pred_region
      %89 = dma.done [#allocation7], 128
    $region33: #{tpu_custom_call.1} parent=1 // pred_fallthru
      _
    // Predicated region
    $region34: #{tpu_custom_call.1} parent=1 // pred_check
      _
    $region35: #{tpu_custom_call.1} parent=1 // pred_check_branch
      %91 = sbr.rel (0) target = $region37
    $region36: #{tpu_custom_call.1} parent=1 // pred_region
      %93 = dma.done [#allocation7], 128
    $region37: #{tpu_custom_call.1} parent=1 // pred_fallthru
      _
    // Predicated region
    $region38: #{tpu_custom_call.1} parent=1 // pred_check
      _
    $region39: #{tpu_custom_call.1} parent=1 // pred_check_branch
      %95 = sbr.rel (0) target = $region41
    $region40: #{tpu_custom_call.1} parent=1 // pred_region
      %97 = dma.done [#allocation10], 1024
    $region41: #{tpu_custom_call.1} parent=1 // pred_fallthru
      _
    // Predicated region
    $region42: #{tpu_custom_call.1} parent=1 // pred_check
      _
    $region43: #{tpu_custom_call.1} parent=1 // pred_check_branch
      %99 = sbr.rel (0) target = $region45
    $region44: #{tpu_custom_call.1} parent=1 // pred_region
      %101 = dma.done [#allocation10], 1024
    $region45: #{tpu_custom_call.1} parent=1 // pred_fallthru
      _
    %p103 = scmp.eq.s32.totalorder 0, 0
    // Predicated region
    $region46: #{tpu_custom_call.1} parent=1 // pred_check
      %p104 = pneg %p103
    $region47: #{tpu_custom_call.1} parent=1 // pred_check_branch
      %106 = sbr.rel (%p104) target = $region49
    $region48: #{tpu_custom_call.1} parent=1 // pred_region
      %107 = vst [vmem:[#allocation2] sm:$0xff] 0.0
      %108 = vst [vmem:[#allocation2 + $0x8] sm:$0xff] 0.0
    $region49: #{tpu_custom_call.1} parent=1 // pred_fallthru
      _
    %s109 = smul.u32 0, 16
    %s110 = sshra.s32 %s109, 3
    %s111 = sand.u32 %s109, 7
    %s112 = smul.addr %s110, 4
    %s113 = scalar_lea.vmem [#allocation6], %s112
    %v114 = vld [vmem:[%s113] sm:$0xf]
    %v115 = vld [vmem:[%s113 + $0x4] sm:$0xf]
    %v116 = vld [vmem:[#allocation2] sm:$0xff]
    %v117 = vld [vmem:[#allocation2 + $0x8] sm:$0xff]
    %v118 = vld [vmem:[#allocation3] sm:$0xf]
    %v119 = vld [vmem:[#allocation3 + $0x4] sm:$0xf]
    %v122 = vunpack.c.l.b16 %v118
    %v123 = vunpack.c.l.b16 %v119
    %v124 = vpack.c.b16 %v123, %v122
    %v127 = vunpack.c.l.b16 %v114
    %v128 = vunpack.c.l.b16 %v115
    %v129 = vpack.c.b16 %v128, %v127
    %vm131 = vcmask 130048
    %v133 = vsel %vm131, %v124, 0
    %135 = vmatpush.bf16.msra.mxu0 0
    %136 = vmatpush.bf16.msra.mxu0 0
    %137 = vmatpush.bf16.msra.mxu0 0
    %138 = vmatpush.bf16.msra.mxu0 0
    %139 = vmatpush.bf16.msra.mxu0 0
    %140 = vmatpush.bf16.msra.mxu0 0
    %141 = vmatpush.bf16.msra.mxu0 0
    %142 = vmatpush.bf16.msra.mxu0 %v129
    %143 = vmatmul.bf16.gmra.mxu0 %v133
    %v144 = vpop.f32.mrf.mxu0
    %v145 = vadd.f32 0.0, %v144
    %v146 = vpop.f32.mrf.mxu0
    %v147 = vadd.f32 0.0, %v146
    %148 = vdwg.mxu0
    %v149 = vadd.f32 %v116, %v145
    %v150 = vadd.f32 %v117, %v147
    %151 = vst [vmem:[#allocation2] sm:$0xff] %v149
    %152 = vst [vmem:[#allocation2 + $0x8] sm:$0xff] %v150
    // Predicated region
    $region50: #{tpu_custom_call.1} parent=1 // pred_check
      %p153 = pneg %p103
    $region51: #{tpu_custom_call.1} parent=1 // pred_check_branch
      %155 = sbr.rel (%p153) target = $region53
    $region52: #{tpu_custom_call.1} parent=1 // pred_region
      %v156 = vld [vmem:[#allocation2] sm:$0xff]
      %v157 = vld [vmem:[#allocation2 + $0x8] sm:$0xff]
      %v158 = vpack.c.bf16 %v157, %v156
      %v159 = vld [vmem:[#allocation9] sm:$0xf]
      %v160 = vld [vmem:[#allocation9 + $0x4] sm:$0xf]
      %v161 = vld [vmem:[#allocation9 + $0x8] sm:$0xf]
      %v162 = vld [vmem:[#allocation9 + $0xc] sm:$0xf]
      %v163 = vld [vmem:[#allocation9 + $0x10] sm:$0xf]
      %v164 = vld [vmem:[#allocation9 + $0x14] sm:$0xf]
      %v165 = vld [vmem:[#allocation9 + $0x18] sm:$0xf]
      %v166 = vld [vmem:[#allocation9 + $0x1c] sm:$0xf]
      %v167 = vld [vmem:[#allocation9 + $0x20] sm:$0xf]
      %v168 = vld [vmem:[#allocation9 + $0x24] sm:$0xf]
      %v169 = vld [vmem:[#allocation9 + $0x28] sm:$0xf]
      %v170 = vld [vmem:[#allocation9 + $0x2c] sm:$0xf]
      %v171 = vld [vmem:[#allocation9 + $0x30] sm:$0xf]
      %v172 = vld [vmem:[#allocation9 + $0x34] sm:$0xf]
      %v173 = vld [vmem:[#allocation9 + $0x38] sm:$0xf]
      %v174 = vld [vmem:[#allocation9 + $0x3c] sm:$0xf]
      %v175 = vld [vmem:[#allocation8] sm:$0xf]
      %v176 = vld [vmem:[#allocation8 + $0x4] sm:$0xf]
      %v177 = vld [vmem:[#allocation11] sm:$0xf]
      %v178 = vld [vmem:[#allocation11 + $0x4] sm:$0xf]
      %v179 = vld [vmem:[#allocation11 + $0x8] sm:$0xf]
      %v180 = vld [vmem:[#allocation11 + $0xc] sm:$0xf]
      %v181 = vld [vmem:[#allocation11 + $0x10] sm:$0xf]
      %v182 = vld [vmem:[#allocation11 + $0x14] sm:$0xf]
      %v183 = vld [vmem:[#allocation11 + $0x18] sm:$0xf]
      %v184 = vld [vmem:[#allocation11 + $0x1c] sm:$0xf]
      %v185 = vld [vmem:[#allocation11 + $0x20] sm:$0xf]
      %v186 = vld [vmem:[#allocation11 + $0x24] sm:$0xf]
      %v187 = vld [vmem:[#allocation11 + $0x28] sm:$0xf]
      %v188 = vld [vmem:[#allocation11 + $0x2c] sm:$0xf]
      %v189 = vld [vmem:[#allocation11 + $0x30] sm:$0xf]
      %v190 = vld [vmem:[#allocation11 + $0x34] sm:$0xf]
      %v191 = vld [vmem:[#allocation11 + $0x38] sm:$0xf]
      %v192 = vld [vmem:[#allocation11 + $0x3c] sm:$0xf]
      %v195 = vunpack.c.l.b16 %v175
      %v196 = vunpack.c.l.b16 %v176
      %v197 = vpack.c.b16 %v196, %v195
      %v215 = vunpack.c.l.b16 %v177
      %v216 = vunpack.c.l.b16 %v178
      %v217 = vunpack.c.l.b16 %v179
      %v218 = vunpack.c.l.b16 %v180
      %v219 = vunpack.c.l.b16 %v181
      %v220 = vunpack.c.l.b16 %v182
      %v221 = vunpack.c.l.b16 %v183
      %v222 = vunpack.c.l.b16 %v184
      %v223 = vunpack.c.l.b16 %v185
      %v224 = vunpack.c.l.b16 %v186
      %v225 = vunpack.c.l.b16 %v187
      %v226 = vunpack.c.l.b16 %v188
      %v227 = vunpack.c.l.b16 %v189
      %v228 = vunpack.c.l.b16 %v190
      %v229 = vunpack.c.l.b16 %v191
      %v230 = vunpack.c.l.b16 %v192
      %v231 = vpack.c.b16 %v216, %v215
      %v232 = vpack.c.b16 %v218, %v217
      %v233 = vpack.c.b16 %v220, %v219
      %v234 = vpack.c.b16 %v222, %v221
      %v235 = vpack.c.b16 %v224, %v223
      %v236 = vpack.c.b16 %v226, %v225
      %v237 = vpack.c.b16 %v228, %v227
      %v238 = vpack.c.b16 %v230, %v229
      %247 = vmatpush.bf16.msra.mxu0 %v238
      %248 = vmatpush.bf16.msra.mxu0 %v237
      %249 = vmatpush.bf16.msra.mxu0 %v236
      %250 = vmatpush.bf16.msra.mxu0 %v235
      %251 = vmatpush.bf16.msra.mxu0 %v234
      %252 = vmatpush.bf16.msra.mxu0 %v233
      %253 = vmatpush.bf16.msra.mxu0 %v232
      %254 = vmatpush.bf16.msra.mxu0 %v231
      %255 = vmatmul.bf16.gmra.mxu0 %v197
      %v256 = vpop.f32.mrf.mxu0
      %v257 = vadd.f32 0.0, %v256
      %v258 = vpop.f32.mrf.mxu0
      %v259 = vadd.f32 0.0, %v258
      %260 = vdwg.mxu0
      %v277 = vunpack.c.l.b16 %v159
      %v278 = vunpack.c.l.b16 %v160
      %v279 = vunpack.c.l.b16 %v161
      %v280 = vunpack.c.l.b16 %v162
      %v281 = vunpack.c.l.b16 %v163
      %v282 = vunpack.c.l.b16 %v164
      %v283 = vunpack.c.l.b16 %v165
      %v284 = vunpack.c.l.b16 %v166
      %v285 = vunpack.c.l.b16 %v167
      %v286 = vunpack.c.l.b16 %v168
      %v287 = vunpack.c.l.b16 %v169
      %v288 = vunpack.c.l.b16 %v170
      %v289 = vunpack.c.l.b16 %v171
      %v290 = vunpack.c.l.b16 %v172
      %v291 = vunpack.c.l.b16 %v173
      %v292 = vunpack.c.l.b16 %v174
      %v293 = vpack.c.b16 %v278, %v277
      %v294 = vpack.c.b16 %v280, %v279
      %v295 = vpack.c.b16 %v282, %v281
      %v296 = vpack.c.b16 %v284, %v283
      %v297 = vpack.c.b16 %v286, %v285
      %v298 = vpack.c.b16 %v288, %v287
      %v299 = vpack.c.b16 %v290, %v289
      %v300 = vpack.c.b16 %v292, %v291
      %309 = vmatpush.bf16.msra.mxu0 %v300
      %310 = vmatpush.bf16.msra.mxu0 %v299
      %311 = vmatpush.bf16.msra.mxu0 %v298
      %312 = vmatpush.bf16.msra.mxu0 %v297
      %313 = vmatpush.bf16.msra.mxu0 %v296
      %314 = vmatpush.bf16.msra.mxu0 %v295
      %315 = vmatpush.bf16.msra.mxu0 %v294
      %316 = vmatpush.bf16.msra.mxu0 %v293
      %317 = vmatmul.bf16.gmra.mxu0 %v158
      %v318 = vpop.f32.mrf.mxu0
      %v319 = vadd.f32 %v257, %v318
      %v320 = vpop.f32.mrf.mxu0
      %v321 = vadd.f32 %v259, %v320
      %322 = vdwg.mxu0
      %v323 = vld [vmem:[%s5] sm:$0x1]
      %v325 = vperm.slane %v323, 0
      %v327 = vadd.f32 %v319, %v325
      %v328 = vadd.f32 %v321, %v325
      %v329 = vmax.f32 %v327, 0.0
      %v330 = vmax.f32 %v328, 0.0
      %v331 = vpack.c.bf16 %v329, %v329
      %v332 = vpack.c.bf16 %v330, %v330
      %333 = vst [vmem:[#allocation12] sm:$0xf] %v331
      %334 = vst [vmem:[#allocation12 + $0x4] sm:$0xf] %v332
    $region53: #{tpu_custom_call.1} parent=1 // pred_fallthru
      _
    // Predicated region
    $region54: #{tpu_custom_call.1} parent=1 // pred_check
      _
    $region55: #{tpu_custom_call.1} parent=1 // pred_check_branch
      %336 = sbr.rel (0) target = $region57
    $region56: #{tpu_custom_call.1} parent=1 // pred_region
      %338 = vsyncadd [#allocation5], 0
      %s339 = sshll.u32 [#allocation12], 4
      %s340 = int_to_ptr.vmem [resolvable:$true] %s339
      %s341 = sshll.u32 %s6, 4
      %s342 = int_to_ptr.hbm [resolvable:$true] %s341
      %347 = dma.vmem_to_hbm [thread:$0]  %s340, 128, %s342, [#allocation5], 64, 64, 4
    $region57: #{tpu_custom_call.1} parent=1 // pred_fallthru
      _
    // Predicated region
    $region58: #{tpu_custom_call.1} parent=1 // pred_check
      _
    $region59: #{tpu_custom_call.1} parent=1 // pred_check_branch
      %349 = sbr.rel (0) target = $region61
    $region60: #{tpu_custom_call.1} parent=1 // pred_region
      %351 = dma.done [#allocation5], 128
    $region61: #{tpu_custom_call.1} parent=1 // pred_fallthru
      _
    %352 = vsyncpa [#allocation4], 1
    %353 = vsyncpa [#allocation7], 1
    %354 = vsyncpa [#allocation10], 1
    %355 = vsyncpa [#allocation5], 1

</llo_original>
